<compile_context>
chip_gen: v5e
topology: v5e:2x2
jax: 0.10.0
libtpu: 0.0.40
codegen_flags: <defaults>
</compile_context>

<pallas_src>
import functools

import jax
import jax.numpy as jnp
from jax.experimental import pallas as pl
from jax.experimental.pallas import tpu as pltpu


_H1 = 128      # feature_net Linear(input_dim, 128)
_H2 = 64       # feature_net Linear(128, 64)
_HH = 32       # head hidden width
_LANES = 128   # padded lane width for fused slabs / output


def _round_up(a, b):
    return (a + b - 1) // b * b


# ----------------------------------------------------------------------------
# Kernel
# ----------------------------------------------------------------------------
def dueling_dqn_kernel(x_ref, wslab_ref, bias_ref, out_ref,
                       *, num_actions, in_pad, matmul_dtype):
    f32 = jnp.float32

    # x tile stays f32 in HBM; cast to the MXU dtype on the VPU (hidden).
    x = x_ref[...].astype(matmul_dtype)            # (TB, in_pad)

    bias = bias_ref[...]                            # (4, 128), f32
    b1 = bias[0:1, :]                               # feature layer 1 bias (full 128)
    b2 = bias[1:2, :]                               # feature layer 2 bias (64 real | 64 zero)
    bh1 = bias[2:3, :]                              # fused head hidden bias (bv1|ba1|zeros)
    bh2 = bias[3:4, :]                              # fused head out bias (ba2 | bv2 | zeros)

    ws = wslab_ref[...]                             # (in_pad + 384, 128), matmul_dtype
    w1 = ws[0:in_pad, :]                            # (in_pad, 128), zero-padded rows
    w2 = ws[in_pad:in_pad + 128, :]                 # (128, 128): cols 64.. are zero
    wh1 = ws[in_pad + 128:in_pad + 256, :]          # (128, 128): [wv1 | wa1] zero-padded
    wh2 = ws[in_pad + 256:in_pad + 384, :]          # (128, 128): block-diag (adv -> cols<A, V -> col A)

    # Shared feature trunk (accumulate in f32, elementwise in f32).
    h1 = jnp.maximum(
        jnp.dot(x, w1, preferred_element_type=f32) + b1, 0.0)
    h2 = jnp.maximum(
        jnp.dot(h1.astype(matmul_dtype), w2, preferred_element_type=f32) + b2, 0.0)

    # Fused value+advantage heads (2 matmuls instead of 4).
    hh = jnp.maximum(
        jnp.dot(h2.astype(matmul_dtype), wh1, preferred_element_type=f32) + bh1, 0.0)
    head = jnp.dot(hh.astype(matmul_dtype), wh2, preferred_element_type=f32) + bh2
    # head layout: cols [0, A) = advantages, col A = value, cols (A, 128) = exact 0.

    # Dueling combine: Q = V + (A - mean(A)).  Padding columns are exactly zero,
    # so sum(head) == sum(advantages) + V and the mean is over the logical A only.
    v = head[:, num_actions:num_actions + 1]                    # (TB, 1)
    row_sum = jnp.sum(head, axis=1, keepdims=True)              # sum(adv) + V  (XLU)
    a_mean = (row_sum - v) * (1.0 / num_actions)

    # Lane-dense (TB, 128) unmasked store; wrapper slices [:, :num_actions].
    out_ref[...] = (head + (v - a_mean)).astype(out_ref.dtype)


# ----------------------------------------------------------------------------
# Param packing: 13 PyTorch tensors -> one weight slab + one bias slab
# ----------------------------------------------------------------------------
def pack_params(params, num_actions, in_pad, matmul_dtype):
    A = num_actions
    f32 = jnp.float32
    input_dim = params["w1"].shape[0]

    w1 = jnp.zeros((in_pad, _LANES), f32).at[:input_dim, :].set(params["w1"])

    w2 = jnp.zeros((_H1, _LANES), f32).at[:, :_H2].set(params["w2"])

    wh1 = jnp.zeros((_LANES, _LANES), f32)
    wh1 = wh1.at[:_H2, :_HH].set(params["wv1"])
    wh1 = wh1.at[:_H2, _HH:2 * _HH].set(params["wa1"])

    wh2 = jnp.zeros((_LANES, _LANES), f32)
    wh2 = wh2.at[_HH:2 * _HH, :A].set(params["wa2"])            # advantages -> cols [0, A)
    wh2 = wh2.at[:_HH, A].set(params["wv2"][:, 0])              # value      -> col A

    w_slab = jnp.concatenate([w1, w2, wh1, wh2], axis=0).astype(matmul_dtype)

    bias = jnp.zeros((4, _LANES), f32)
    bias = bias.at[0, :].set(params["b1"][0])
    bias = bias.at[1, :_H2].set(params["b2"][0])
    bias = bias.at[2, :_HH].set(params["bv1"][0])
    bias = bias.at[2, _HH:2 * _HH].set(params["ba1"][0])
    bias = bias.at[3, :A].set(params["ba2"][0])
    bias = bias.at[3, A].set(params["bv2"][0, 0])
    return w_slab, bias


# ----------------------------------------------------------------------------
# Wrapper
# ----------------------------------------------------------------------------
def dueling_dqn_forward(x, params, num_actions, *, block_batch=1024,
                        matmul_dtype=jnp.bfloat16):
    """x: (batch, input_dim) float32.  params: dict of (in,out) weights and
    (1,out) biases.  Returns (batch, num_actions) float32 Q-values."""
    assert num_actions + 1 <= _LANES, "fused head assumes num_actions < 128"
    batch, input_dim = x.shape

    # Pad K to a 16-aligned width so bf16 sublane slicing of the slab is clean.
    in_pad = _round_up(input_dim, 16)

    # Batch tile: multiple of 8 sublanes, capped by the requested block size.
    tb = max(8, _round_up(min(block_batch, batch), 8))
    b_pad = _round_up(batch, tb)

    # Single pad covering batch rows and K columns; elided by XLA when no-op.
    x_p = jnp.pad(x, ((0, b_pad - batch), (0, in_pad - input_dim)))

    w_slab, bias_slab = pack_params(params, num_actions, in_pad, matmul_dtype)

    kernel = functools.partial(
        dueling_dqn_kernel, num_actions=num_actions, in_pad=in_pad,
        matmul_dtype=matmul_dtype)

    out_padded = pl.pallas_call(
        kernel,
        grid=(pl.cdiv(b_pad, tb),),
        out_shape=jax.ShapeDtypeStruct((b_pad, _LANES), jnp.float32),
        in_specs=[
            pl.BlockSpec((tb, in_pad), lambda i: (i, 0)),                 # x tile (f32)
            pl.BlockSpec((in_pad + 3 * _LANES, _LANES), lambda i: (0, 0)),  # weight slab (resident)
            pl.BlockSpec((4, _LANES), lambda i: (0, 0)),                  # bias slab (resident)
        ],
        out_specs=pl.BlockSpec((tb, _LANES), lambda i: (i, 0)),
        compiler_params=pltpu.CompilerParams(
            dimension_semantics=("parallel",)),
    )(x_p, w_slab, bias_slab)

    return out_padded[:batch, :num_actions]


# ----------------------------------------------------------------------------
# Init + pure-JAX reference
# ----------------------------------------------------------------------------
def init_params(key, input_dim, num_actions):
    """Deterministic synthetic init (Kaiming-uniform-like weights, PyTorch-style
    uniform biases), stored as (in, out) weights and (1, out) biases."""
    def kaiming_uniform(k, fan_in, fan_out):
        bound = jnp.sqrt(6.0 / fan_in)
        return jax.random.uniform(k, (fan_in, fan_out), jnp.float32, -bound, bound)

    def bias_init(k, fan_in, fan_out):
        bound = 1.0 / jnp.sqrt(fan_in)
        return jax.random.uniform(k, (1, fan_out), jnp.float32, -bound, bound)

    keys = jax.random.split(key, 12)
    dims = [
        ("w1", "b1", input_dim, 128),
        ("w2", "b2", 128, 64),
        ("wv1", "bv1", 64, 32),
        ("wv2", "bv2", 32, 1),
        ("wa1", "ba1", 64, 32),
        ("wa2", "ba2", 32, num_actions),
    ]
    params = {}
    for i, (wn, bn, fi, fo) in enumerate(dims):
        params[wn] = kaiming_uniform(keys[2 * i], fi, fo)
        params[bn] = bias_init(keys[2 * i + 1], fi, fo)
    return params


def reference_forward(x, p):
    hi = jax.lax.Precision.HIGHEST
    dot = lambda a, b: jnp.dot(a, b, precision=hi)
    h = jax.nn.relu(dot(x, p["w1"]) + p["b1"])
    h = jax.nn.relu(dot(h, p["w2"]) + p["b2"])
    v = dot(jax.nn.relu(dot(h, p["wv1"]) + p["bv1"]), p["wv2"]) + p["bv2"]
    a = dot(jax.nn.relu(dot(h, p["wa1"]) + p["ba1"]), p["wa2"]) + p["ba2"]
    return v + (a - a.mean(axis=1, keepdims=True))


if __name__ == "__main__":
    batch, input_dim, num_actions = 8, 16, 6

    key = jax.random.PRNGKey(0)
    k_x, k_x2, k_p = jax.random.split(key, 3)
    x = jax.random.normal(k_x, (batch, input_dim), dtype=jnp.float32)
    params = init_params(k_p, input_dim, num_actions)
    ref = reference_forward(x, params)

    # f32 path: tight check against the reference.
    out_f32 = jax.block_until_ready(
        dueling_dqn_forward(x, params, num_actions, matmul_dtype=jnp.float32))
    assert out_f32.shape == (batch, num_actions)
    assert jnp.allclose(out_f32, ref, atol=1e-3, rtol=1e-3), "f32 mismatch vs reference"

    # bf16 MXU path (v6e/v7x fast path): looser tolerance.
    out_bf16 = jax.block_until_ready(
        dueling_dqn_forward(x, params, num_actions, matmul_dtype=jnp.bfloat16))
    assert out_bf16.shape == (batch, num_actions)
    assert jnp.allclose(out_bf16, ref, atol=1.5e-1, rtol=5e-2), "bf16 mismatch vs reference"

    # Larger, non-tile-aligned batch: exercises the batch grid + padding path.
    batch2 = 260
    x2 = jax.random.normal(k_x2, (batch2, input_dim), dtype=jnp.float32)
    ref2 = reference_forward(x2, params)
    out2 = jax.block_until_ready(
        dueling_dqn_forward(x2, params, num_actions,
                            block_batch=128, matmul_dtype=jnp.float32))
    assert out2.shape == (batch2, num_actions)
    assert jnp.allclose(out2, ref2, atol=1e-3, rtol=1e-3), "tiled mismatch vs reference"

    print("KERNEL_OK")
</pallas_src>

<mosaic_0001>
module attributes {stable_mosaic.version = 11 : i64} {
  func.func @dueling_dqn_kernel(%arg0: i32, %arg1: memref<8x16xf32, #tpu.memory_space<vmem>>, %arg2: memref<400x128xf32, #tpu.memory_space<vmem>>, %arg3: memref<4x128xf32, #tpu.memory_space<vmem>>, %arg4: memref<8x128xf32, #tpu.memory_space<vmem>>) attributes {dimension_semantics = [#tpu.dimension_semantics<parallel>], iteration_bounds = array<i64: 1>, scalar_prefetch = 0 : i64, scratch_operands = 0 : i64, tpu.core_type = #tpu.core_type<tc>, window_params = [{transform_indices = @transform_0, window_bounds = array<i64: 8, 16>}, {pipeline_mode = #tpu.pipeline_mode<synchronous>, transform_indices = @transform_1, window_bounds = array<i64: 400, 128>}, {pipeline_mode = #tpu.pipeline_mode<synchronous>, transform_indices = @transform_2, window_bounds = array<i64: 4, 128>}, {transform_indices = @transform_3, window_bounds = array<i64: 8, 128>}]} {
    %c0 = arith.constant 0 : index
    %c0_0 = arith.constant 0 : index
    %0 = vector.load %arg1[%c0, %c0_0] : memref<8x16xf32, #tpu.memory_space<vmem>>, vector<8x16xf32>
    %c0_1 = arith.constant 0 : index
    %c0_2 = arith.constant 0 : index
    %1 = vector.load %arg3[%c0_1, %c0_2] : memref<4x128xf32, #tpu.memory_space<vmem>>, vector<4x128xf32>
    %2 = vector.extract_strided_slice %1 {offsets = [0, 0], sizes = [1, 128], strides = [1, 1]} : vector<4x128xf32> to vector<1x128xf32>
    %3 = vector.extract_strided_slice %1 {offsets = [1, 0], sizes = [1, 128], strides = [1, 1]} : vector<4x128xf32> to vector<1x128xf32>
    %4 = vector.extract_strided_slice %1 {offsets = [2, 0], sizes = [1, 128], strides = [1, 1]} : vector<4x128xf32> to vector<1x128xf32>
    %5 = vector.extract_strided_slice %1 {offsets = [3, 0], sizes = [1, 128], strides = [1, 1]} : vector<4x128xf32> to vector<1x128xf32>
    %c0_3 = arith.constant 0 : index
    %c0_4 = arith.constant 0 : index
    %6 = vector.load %arg2[%c0_3, %c0_4] : memref<400x128xf32, #tpu.memory_space<vmem>>, vector<400x128xf32>
    %7 = vector.extract_strided_slice %6 {offsets = [0, 0], sizes = [16, 128], strides = [1, 1]} : vector<400x128xf32> to vector<16x128xf32>
    %8 = vector.extract_strided_slice %6 {offsets = [16, 0], sizes = [128, 128], strides = [1, 1]} : vector<400x128xf32> to vector<128x128xf32>
    %9 = vector.extract_strided_slice %6 {offsets = [144, 0], sizes = [128, 128], strides = [1, 1]} : vector<400x128xf32> to vector<128x128xf32>
    %10 = vector.extract_strided_slice %6 {offsets = [272, 0], sizes = [128, 128], strides = [1, 1]} : vector<400x128xf32> to vector<128x128xf32>
    %cst = arith.constant dense<0.000000e+00> : vector<8x128xf32>
    %11 = tpu.matmul %0, %7, %cst {dimension_numbers = #tpu.dot_dimension_numbers<[1], [0], [0], [1], [0, 0, 1, 1], [], []>} : vector<8x16xf32>, vector<16x128xf32>, vector<8x128xf32> -> vector<8x128xf32>
    %12 = vector.broadcast %2 : vector<1x128xf32> to vector<8x128xf32>
    %13 = arith.addf %11, %12 : vector<8x128xf32>
    %cst_5 = arith.constant 0.000000e+00 : f32
    %14 = vector.broadcast %cst_5 : f32 to vector<8x128xf32>
    %15 = arith.maximumf %13, %14 : vector<8x128xf32>
    %cst_6 = arith.constant dense<0.000000e+00> : vector<8x128xf32>
    %16 = tpu.matmul %15, %8, %cst_6 {dimension_numbers = #tpu.dot_dimension_numbers<[1], [0], [0], [1], [0, 0, 1, 1], [], []>} : vector<8x128xf32>, vector<128x128xf32>, vector<8x128xf32> -> vector<8x128xf32>
    %17 = vector.broadcast %3 : vector<1x128xf32> to vector<8x128xf32>
    %18 = arith.addf %16, %17 : vector<8x128xf32>
    %cst_7 = arith.constant 0.000000e+00 : f32
    %19 = vector.broadcast %cst_7 : f32 to vector<8x128xf32>
    %20 = arith.maximumf %18, %19 : vector<8x128xf32>
    %cst_8 = arith.constant dense<0.000000e+00> : vector<8x128xf32>
    %21 = tpu.matmul %20, %9, %cst_8 {dimension_numbers = #tpu.dot_dimension_numbers<[1], [0], [0], [1], [0, 0, 1, 1], [], []>} : vector<8x128xf32>, vector<128x128xf32>, vector<8x128xf32> -> vector<8x128xf32>
    %22 = vector.broadcast %4 : vector<1x128xf32> to vector<8x128xf32>
    %23 = arith.addf %21, %22 : vector<8x128xf32>
    %cst_9 = arith.constant 0.000000e+00 : f32
    %24 = vector.broadcast %cst_9 : f32 to vector<8x128xf32>
    %25 = arith.maximumf %23, %24 : vector<8x128xf32>
    %cst_10 = arith.constant dense<0.000000e+00> : vector<8x128xf32>
    %26 = tpu.matmul %25, %10, %cst_10 {dimension_numbers = #tpu.dot_dimension_numbers<[1], [0], [0], [1], [0, 0, 1, 1], [], []>} : vector<8x128xf32>, vector<128x128xf32>, vector<8x128xf32> -> vector<8x128xf32>
    %27 = vector.broadcast %5 : vector<1x128xf32> to vector<8x128xf32>
    %28 = arith.addf %26, %27 : vector<8x128xf32>
    %29 = vector.extract_strided_slice %28 {offsets = [0, 6], sizes = [8, 1], strides = [1, 1]} : vector<8x128xf32> to vector<8x1xf32>
    %cst_11 = arith.constant dense<0.000000e+00> : vector<8xf32>
    %30 = vector.multi_reduction <add>, %28, %cst_11 [1] : vector<8x128xf32> to vector<8xf32>
    %31 = vector.shape_cast %30 : vector<8xf32> to vector<8x1xf32>
    %32 = arith.subf %31, %29 : vector<8x1xf32>
    %cst_12 = arith.constant 0.166666672 : f32
    %33 = vector.broadcast %cst_12 : f32 to vector<8x1xf32>
    %34 = arith.mulf %32, %33 : vector<8x1xf32>
    %35 = arith.subf %29, %34 : vector<8x1xf32>
    %36 = vector.broadcast %35 : vector<8x1xf32> to vector<8x128xf32>
    %37 = arith.addf %28, %36 : vector<8x128xf32>
    %c0_13 = arith.constant 0 : index
    %c0_14 = arith.constant 0 : index
    %38 = vector.load %arg4[%c0_13, %c0_14] : memref<8x128xf32, #tpu.memory_space<vmem>>, vector<8x128xf32>
    tpu.vector_store %arg4[%c0_13, %c0_14], %37 {strides = array<i32>} : memref<8x128xf32, #tpu.memory_space<vmem>>, vector<8x128xf32>,
    return
  }
  func.func @transform_0(%arg0: i32) -> (i32, i32) {
    %c0_i32 = arith.constant 0 : i32
    %c0_i32_0 = arith.constant 0 : i32
    return %arg0, %c0_i32 : i32, i32
  }
  func.func @transform_1(%arg0: i32) -> (i32, i32) {
    %c0_i32 = arith.constant 0 : i32
    %c0_i32_0 = arith.constant 0 : i32
    %c0_i32_1 = arith.constant 0 : i32
    return %c0_i32, %c0_i32_0 : i32, i32
  }
  func.func @transform_2(%arg0: i32) -> (i32, i32) {
    %c0_i32 = arith.constant 0 : i32
    %c0_i32_0 = arith.constant 0 : i32
    %c0_i32_1 = arith.constant 0 : i32
    return %c0_i32, %c0_i32_0 : i32, i32
  }
  func.func @transform_3(%arg0: i32) -> (i32, i32) {
    %c0_i32 = arith.constant 0 : i32
    %c0_i32_0 = arith.constant 0 : i32
    return %arg0, %c0_i32 : i32, i32
  }
}

</mosaic_0001>

<llo_original>
// kernel: tpu_custom_call.1
$region0: #{tpu_custom_call.1}
  #allocation0 [shape = 'u32[]', space=smem, size = 0x4, offset = 0x4, fixed_abs, tag = 'smem constant byte address 0x4 - core index']
  #allocation1 [shape = 'u32[72,128]{1,0:T(1,128)}', space=vmem, size = 0x9000, scoped, tag = 'internal scratch']
  %s0 = inlined_call_operand.hbm [shape: f32[8,16], index: 0, kind: input, shape index: {}]
  %s1 = inlined_call_operand.hbm [shape: f32[400,128], index: 1, kind: input, shape index: {}]
  %s2 = inlined_call_operand.hbm [shape: f32[4,128], index: 2, kind: input, shape index: {}]
  %s3 = inlined_call_operand.hbm [shape: f32[8,128], index: 3, kind: output, shape index: {}]
  %s4 = sld [smem:[#allocation0]]
  $region34: #{tpu_custom_call.1} parent=0
    _
  %s6 = ssub.s32 1, %s4
  %s7 = scalar_select 0, %s6, %s4
  $region1: #{tpu_custom_call.1} parent=0
    #allocation2 [shape = 'u8[4096]{0}', space=vmem, size = 0x1000, scoped, tag = 'input window, operand 0, single buffered']
    #allocation3 [shape = 's32[1]{0}', space=sflag, size = 0x4, scoped, tag = 'scoped memory for tpu_custom_call.1']
    #allocation4 [shape = 's32[1]{0}', space=sflag, size = 0x4, scoped, tag = 'scoped memory for tpu_custom_call.1']
    #allocation5 [shape = 'u8[204800]{0}', space=vmem, size = 0x32000, scoped, tag = 'input window, operand 1, single buffered']
    #allocation6 [shape = 's32[1]{0}', space=sflag, size = 0x4, scoped, tag = 'scoped memory for tpu_custom_call.1']
    #allocation7 [shape = 'u8[2048]{0}', space=vmem, size = 0x800, scoped, tag = 'input window, operand 2, single buffered']
    #allocation8 [shape = 'u8[4096]{0}', space=vmem, size = 0x1000, scoped, tag = 'output window, operand 0, single buffered']
    %8 = vsyncpa [#allocation3], 0
    %9 = vsyncpa [#allocation6], 0
    %10 = vsyncpa [#allocation4], 0
    // Predicated region
    $region2: #{tpu_custom_call.1} parent=1 // pred_check
      _
    $region3: #{tpu_custom_call.1} parent=1 // pred_check_branch
      %12 = sbr.rel (0) target = $region5
    $region4: #{tpu_custom_call.1} parent=1 // pred_region
      %14 = vsyncadd [#allocation3], 0
      %s16 = sshll.u32 %s0, 4
      %s17 = int_to_ptr.hbm [resolvable:$true] %s16
      %s18 = sshll.u32 [#allocation2], 4
      %s19 = int_to_ptr.vmem [resolvable:$true] %s18
      %21 = dma.hbm_to_vmem [thread:$0]  %s17, 128, %s19, [#allocation3]
    $region5: #{tpu_custom_call.1} parent=1 // pred_fallthru
      _
    // Predicated region
    $region6: #{tpu_custom_call.1} parent=1 // pred_check
      _
    $region7: #{tpu_custom_call.1} parent=1 // pred_check_branch
      %23 = sbr.rel (0) target = $region9
    $region8: #{tpu_custom_call.1} parent=1 // pred_region
      %25 = vsyncadd [#allocation6], 0
      %s26 = sshll.u32 %s1, 4
      %s27 = int_to_ptr.hbm [resolvable:$true] %s26
      %s28 = sshll.u32 [#allocation5], 4
      %s29 = int_to_ptr.vmem [resolvable:$true] %s28
      %34 = dma.hbm_to_vmem [thread:$0]  %s27, 6400, %s29, [#allocation6], 128, 128, 8
    $region9: #{tpu_custom_call.1} parent=1 // pred_fallthru
      _
    // Predicated region
    $region10: #{tpu_custom_call.1} parent=1 // pred_check
      _
    $region11: #{tpu_custom_call.1} parent=1 // pred_check_branch
      %36 = sbr.rel (0) target = $region13
    $region12: #{tpu_custom_call.1} parent=1 // pred_region
      %38 = vsyncadd [#allocation6], 0
      %s40 = sshll.u32 %s2, 4
      %s41 = int_to_ptr.hbm [resolvable:$true] %s40
      %s42 = sshll.u32 [#allocation7], 4
      %s43 = int_to_ptr.vmem [resolvable:$true] %s42
      %45 = dma.hbm_to_vmem [thread:$0]  %s41, 64, %s43, [#allocation6]
    $region13: #{tpu_custom_call.1} parent=1 // pred_fallthru
      _
    // Predicated region
    $region14: #{tpu_custom_call.1} parent=1 // pred_check
      _
    $region15: #{tpu_custom_call.1} parent=1 // pred_check_branch
      %47 = sbr.rel (0) target = $region17
    $region16: #{tpu_custom_call.1} parent=1 // pred_region
      %49 = dma.done [#allocation3], 128
    $region17: #{tpu_custom_call.1} parent=1 // pred_fallthru
      _
    // Predicated region
    $region18: #{tpu_custom_call.1} parent=1 // pred_check
      _
    $region19: #{tpu_custom_call.1} parent=1 // pred_check_branch
      %51 = sbr.rel (0) target = $region21
    $region20: #{tpu_custom_call.1} parent=1 // pred_region
      %53 = dma.done [#allocation6], 6400
    $region21: #{tpu_custom_call.1} parent=1 // pred_fallthru
      _
    // Predicated region
    $region22: #{tpu_custom_call.1} parent=1 // pred_check
      _
    $region23: #{tpu_custom_call.1} parent=1 // pred_check_branch
      %55 = sbr.rel (0) target = $region25
    $region24: #{tpu_custom_call.1} parent=1 // pred_region
      %57 = dma.done [#allocation6], 64
    $region25: #{tpu_custom_call.1} parent=1 // pred_fallthru
      _
    %v58 = vld [vmem:[#allocation2] sm:$0xff]
    %v59 = vld [vmem:[#allocation7] sm:$0xf]
    %v60 = vld [vmem:[#allocation5] sm:$0xff]
    %v61 = vld [vmem:[#allocation5 + $0x8] sm:$0xff]
    %v62 = vld [vmem:[#allocation5 + $0x10] sm:$0xff]
    %v63 = vld [vmem:[#allocation5 + $0x18] sm:$0xff]
    %v64 = vld [vmem:[#allocation5 + $0x20] sm:$0xff]
    %v65 = vld [vmem:[#allocation5 + $0x28] sm:$0xff]
    %v66 = vld [vmem:[#allocation5 + $0x30] sm:$0xff]
    %v67 = vld [vmem:[#allocation5 + $0x38] sm:$0xff]
    %v68 = vld [vmem:[#allocation5 + $0x40] sm:$0xff]
    %v69 = vld [vmem:[#allocation5 + $0x48] sm:$0xff]
    %v70 = vld [vmem:[#allocation5 + $0x50] sm:$0xff]
    %v71 = vld [vmem:[#allocation5 + $0x58] sm:$0xff]
    %v72 = vld [vmem:[#allocation5 + $0x60] sm:$0xff]
    %v73 = vld [vmem:[#allocation5 + $0x68] sm:$0xff]
    %v74 = vld [vmem:[#allocation5 + $0x70] sm:$0xff]
    %v75 = vld [vmem:[#allocation5 + $0x78] sm:$0xff]
    %v76 = vld [vmem:[#allocation5 + $0x80] sm:$0xff]
    %v77 = vld [vmem:[#allocation5 + $0x88] sm:$0xff]
    %v78 = vld [vmem:[#allocation5 + $0x90] sm:$0xff]
    %v79 = vld [vmem:[#allocation5 + $0x98] sm:$0xff]
    %v80 = vld [vmem:[#allocation5 + $0xa0] sm:$0xff]
    %v81 = vld [vmem:[#allocation5 + $0xa8] sm:$0xff]
    %v82 = vld [vmem:[#allocation5 + $0xb0] sm:$0xff]
    %v83 = vld [vmem:[#allocation5 + $0xb8] sm:$0xff]
    %v84 = vld [vmem:[#allocation5 + $0xc0] sm:$0xff]
    %v85 = vld [vmem:[#allocation5 + $0xc8] sm:$0xff]
    %v86 = vld [vmem:[#allocation5 + $0xd0] sm:$0xff]
    %v87 = vld [vmem:[#allocation5 + $0xd8] sm:$0xff]
    %v88 = vld [vmem:[#allocation5 + $0xe0] sm:$0xff]
    %v89 = vld [vmem:[#allocation5 + $0xe8] sm:$0xff]
    %v90 = vld [vmem:[#allocation5 + $0xf0] sm:$0xff]
    %v91 = vld [vmem:[#allocation5 + $0xf8] sm:$0xff]
    %v92 = vld [vmem:[#allocation5 + $0x100] sm:$0xff]
    %v93 = vld [vmem:[#allocation5 + $0x108] sm:$0xff]
    %v94 = vld [vmem:[#allocation5 + $0x110] sm:$0xff]
    %v95 = vld [vmem:[#allocation5 + $0x118] sm:$0xff]
    %v96 = vld [vmem:[#allocation5 + $0x120] sm:$0xff]
    %v97 = vld [vmem:[#allocation5 + $0x128] sm:$0xff]
    %v98 = vld [vmem:[#allocation5 + $0x130] sm:$0xff]
    %v99 = vld [vmem:[#allocation5 + $0x138] sm:$0xff]
    %v100 = vld [vmem:[#allocation5 + $0x140] sm:$0xff]
    %v101 = vld [vmem:[#allocation5 + $0x148] sm:$0xff]
    %v102 = vld [vmem:[#allocation5 + $0x150] sm:$0xff]
    %v103 = vld [vmem:[#allocation5 + $0x158] sm:$0xff]
    %v104 = vld [vmem:[#allocation5 + $0x160] sm:$0xff]
    %v105 = vld [vmem:[#allocation5 + $0x168] sm:$0xff]
    %v106 = vld [vmem:[#allocation5 + $0x170] sm:$0xff]
    %v107 = vld [vmem:[#allocation5 + $0x178] sm:$0xff]
    %v108 = vld [vmem:[#allocation5 + $0x180] sm:$0xff]
    %v109 = vld [vmem:[#allocation5 + $0x188] sm:$0xff]
    %v110 = vperm.slane %v59, 0
    %vm111 = vcmask 130048
    %v113 = vsel %vm111, %v58, 0
    %115 = vmatpush.msra.mxu0 0.0
    %116 = vmatpush.msra.mxu0 0.0
    %117 = vmatpush.msra.mxu0 0.0
    %118 = vmatpush.msra.mxu0 0.0
    %119 = vmatpush.msra.mxu0 0.0
    %120 = vmatpush.msra.mxu0 0.0
    %121 = vmatpush.msra.mxu0 0.0
    %122 = vmatpush.msra.mxu0 0.0
    %123 = vmatpush.msra.mxu0 0.0
    %124 = vmatpush.msra.mxu0 0.0
    %125 = vmatpush.msra.mxu0 0.0
    %126 = vmatpush.msra.mxu0 0.0
    %127 = vmatpush.msra.mxu0 0.0
    %128 = vmatpush.msra.mxu0 0.0
    %129 = vmatpush.msra.mxu0 %v61
    %130 = vmatpush.msra.mxu0 %v60
    %131 = vmatmul.f32.gmra.mxu0 %v113
    %v132 = vpop.f32.mrf.mxu0
    %v133 = vadd.f32 %v110, %v132
    %134 = vdwg.mxu0
    %v135 = vmax.f32 %v133, 0.0
    %v136 = vperm.slane %v59, 1
    %137 = vmatpush.msra.mxu0 %v77
    %138 = vmatpush.msra.mxu0 %v76
    %139 = vmatpush.msra.mxu0 %v75
    %140 = vmatpush.msra.mxu0 %v74
    %141 = vmatpush.msra.mxu0 %v73
    %142 = vmatpush.msra.mxu0 %v72
    %143 = vmatpush.msra.mxu0 %v71
    %144 = vmatpush.msra.mxu0 %v70
    %145 = vmatpush.msra.mxu0 %v69
    %146 = vmatpush.msra.mxu0 %v68
    %147 = vmatpush.msra.mxu0 %v67
    %148 = vmatpush.msra.mxu0 %v66
    %149 = vmatpush.msra.mxu0 %v65
    %150 = vmatpush.msra.mxu0 %v64
    %151 = vmatpush.msra.mxu0 %v63
    %152 = vmatpush.msra.mxu0 %v62
    %153 = vmatmul.f32.gmra.mxu0 %v135
    %v154 = vpop.f32.mrf.mxu0
    %v155 = vadd.f32 %v136, %v154
    %156 = vdwg.mxu0
    %v157 = vmax.f32 %v155, 0.0
    %v158 = vperm.slane %v59, 2
    %159 = vmatpush.msra.mxu0 %v93
    %160 = vmatpush.msra.mxu0 %v92
    %161 = vmatpush.msra.mxu0 %v91
    %162 = vmatpush.msra.mxu0 %v90
    %163 = vmatpush.msra.mxu0 %v89
    %164 = vmatpush.msra.mxu0 %v88
    %165 = vmatpush.msra.mxu0 %v87
    %166 = vmatpush.msra.mxu0 %v86
    %167 = vmatpush.msra.mxu0 %v85
    %168 = vmatpush.msra.mxu0 %v84
    %169 = vmatpush.msra.mxu0 %v83
    %170 = vmatpush.msra.mxu0 %v82
    %171 = vmatpush.msra.mxu0 %v81
    %172 = vmatpush.msra.mxu0 %v80
    %173 = vmatpush.msra.mxu0 %v79
    %174 = vmatpush.msra.mxu0 %v78
    %175 = vmatmul.f32.gmra.mxu0 %v157
    %v176 = vpop.f32.mrf.mxu0
    %v177 = vadd.f32 %v158, %v176
    %178 = vdwg.mxu0
    %v179 = vmax.f32 %v177, 0.0
    %v180 = vperm.slane %v59, 3
    %181 = vmatpush.msra.mxu0 %v109
    %182 = vmatpush.msra.mxu0 %v108
    %183 = vmatpush.msra.mxu0 %v107
    %184 = vmatpush.msra.mxu0 %v106
    %185 = vmatpush.msra.mxu0 %v105
    %186 = vmatpush.msra.mxu0 %v104
    %187 = vmatpush.msra.mxu0 %v103
    %188 = vmatpush.msra.mxu0 %v102
    %189 = vmatpush.msra.mxu0 %v101
    %190 = vmatpush.msra.mxu0 %v100
    %191 = vmatpush.msra.mxu0 %v99
    %192 = vmatpush.msra.mxu0 %v98
    %193 = vmatpush.msra.mxu0 %v97
    %194 = vmatpush.msra.mxu0 %v96
    %195 = vmatpush.msra.mxu0 %v95
    %196 = vmatpush.msra.mxu0 %v94
    %197 = vmatmul.f32.gmra.mxu0 %v179
    %v198 = vpop.f32.mrf.mxu0
    %v199 = vadd.f32 %v180, %v198
    %200 = vdwg.mxu0
    %201 = vadd.xlane.f32.xlu0 %v199
    %v202 = vpop.xlane.xlu0 %201
    %v203 = vsub.f32 %v202, %v199
    %v204 = vmul.f32 %v203, 0.16666667
    %v205 = vsub.f32 %v199, %v204
    %207 = vset.pattern.permute.xlu0 6
    %208 = vperm.xlu0 %207, %v205
    %v209 = vpop.permute.xlu0 %208
    %v211 = vadd.f32 %v199, %v209
    %212 = vst [vmem:[#allocation8] sm:$0xff] %v211
    // Predicated region
    $region26: #{tpu_custom_call.1} parent=1 // pred_check
      _
    $region27: #{tpu_custom_call.1} parent=1 // pred_check_branch
      %214 = sbr.rel (0) target = $region29
    $region28: #{tpu_custom_call.1} parent=1 // pred_region
      %216 = vsyncadd [#allocation4], 0
      %s218 = sshll.u32 [#allocation8], 4
      %s219 = int_to_ptr.vmem [resolvable:$true] %s218
      %s220 = sshll.u32 %s3, 4
      %s221 = int_to_ptr.hbm [resolvable:$true] %s220
      %223 = dma.vmem_to_hbm [thread:$0]  %s219, 128, %s221, [#allocation4]
    $region29: #{tpu_custom_call.1} parent=1 // pred_fallthru
      _
    // Predicated region
    $region30: #{tpu_custom_call.1} parent=1 // pred_check
      _
    $region31: #{tpu_custom_call.1} parent=1 // pred_check_branch
      %225 = sbr.rel (0) target = $region33
    $region32: #{tpu_custom_call.1} parent=1 // pred_region
      %227 = dma.done [#allocation4], 128
    $region33: #{tpu_custom_call.1} parent=1 // pred_fallthru
      _
    %228 = vsyncpa [#allocation3], 1
    %229 = vsyncpa [#allocation6], 1
    %230 = vsyncpa [#allocation4], 1

</llo_original>
